<compile_context>
chip_gen: v7x
topology: tpu7x:2x2x1
jax: 0.10.0
libtpu: 0.0.40
codegen_flags: <defaults>
</compile_context>

<pallas_src>
import functools

import jax
import jax.numpy as jnp
from jax import lax
from jax.experimental import pallas as pl
from jax.experimental.pallas import tpu as pltpu


# Static row-tile buckets: bounds the number of compiled variants while still
# amortizing the ~0.35-0.6 us per-grid-step overhead at large M.
_TM_BUCKETS = (128, 512, 2048)


def _round_up(x, m):
    return (x + m - 1) // m * m


def _cdiv(a, b):
    return (a + b - 1) // b


def _detect_num_tensorcores():
    """Best-effort TensorCores per chip: v7x has 2, v5e/v6e have 1."""
    try:
        kind = jax.devices()[0].device_kind.lower()
    except Exception:
        return 1
    return 2 if ("v7" in kind or "tpu7" in kind) else 1


def _mlp_math(x_ref, w1_ref, b1_ref, w2_ref, b2_ref, w3t_ref, b3_ref):
    """Shared MLP body: returns f32 (tm, d_out) acquisition values."""
    cd = w1_ref.dtype  # compute dtype for the MXU layers (bf16 by default)
    x = x_ref[...].astype(cd)
    # Layer 1 (MXU, f32 accumulation); relu + downcast fused so the (tm, h1)
    # intermediate lives in VMEM as bf16 (halves spill traffic into layer 2).
    h1 = jnp.dot(x, w1_ref[...], preferred_element_type=jnp.float32) + b1_ref[...]
    h1 = jnp.maximum(h1, 0.0).astype(cd)
    # Layer 2 (MXU, f32 accumulation).
    h2 = jnp.dot(h1, w2_ref[...], preferred_element_type=jnp.float32) + b2_ref[...]
    h2 = jnp.maximum(h2, 0.0)
    # Layer 3: d_out==1 -> VPU multiply + XLU lane reduce (no wasted MXU push).
    d_out = w3t_ref.shape[0]
    if d_out == 1:
        out = jnp.sum(h2 * w3t_ref[...], axis=-1, keepdims=True)
    else:
        # General case: contract hidden dim of h2 (tm, h) with w3t (d_out, h).
        out = lax.dot_general(h2, w3t_ref[...],
                              dimension_numbers=(((1,), (1,)), ((), ())),
                              preferred_element_type=jnp.float32)
    return out + b3_ref[...]


def _kernel_masked(x_ref, mask_ref, w1_ref, b1_ref, w2_ref, b2_ref,
                   w3t_ref, b3_ref, o_ref):
    out = _mlp_math(x_ref, w1_ref, b1_ref, w2_ref, b2_ref, w3t_ref, b3_ref)
    # Mask arrives in its native (possibly narrow) dtype; cast in-register.
    o_ref[...] = (out * mask_ref[...].astype(jnp.float32)).astype(o_ref.dtype)


def _kernel_nomask(x_ref, w1_ref, b1_ref, w2_ref, b2_ref, w3t_ref, b3_ref,
                   o_ref):
    out = _mlp_math(x_ref, w1_ref, b1_ref, w2_ref, b2_ref, w3t_ref, b3_ref)
    o_ref[...] = out.astype(o_ref.dtype)


def _vmem_limit_bytes(tm, d_in, h1d, h2d, d_out, feat_itemsize, mask_itemsize):
    """Right-sized VMEM budget derived from the per-step working set."""
    per_step = (
        2 * tm * d_in * feat_itemsize          # double-buffered feature tiles
        + 2 * tm * 1 * mask_itemsize           # double-buffered mask tiles
        + 2 * tm * d_out * 4                   # double-buffered output tiles
        + tm * h1d * 2 + tm * h2d * 4          # live h1 (bf16) + h2 (f32)
        + 2 * (d_in * h1d + h1d * h2d) * 2     # bf16 weights (double-buffered)
        + 2 * (h1d + h2d + d_out * h2d + d_out) * 4)  # biases + w3t (f32)
    limit = 2 * per_step + (4 << 20)           # 2x margin + 4 MiB slack
    # Keep within v7x's scoped budget (64 MiB physical VMEM there).
    return int(min(max(limit, 16 << 20), 40 << 20))


@functools.partial(jax.jit, static_argnames=("tm",))
def _run_mlp(feat2d, w1, b1, w2, b2, w3t, b3, mask2d, *, tm):
    M, d_in = feat2d.shape
    h1d = w1.shape[1]
    h2d = w2.shape[1]
    d_out = w3t.shape[0]
    has_mask = mask2d is not None

    grid = (_cdiv(M, tm),)  # ragged final block is masked by Pallas (no pad)

    # Advisory cost so XLA overlaps the surrounding reshape with the call.
    flops = 2 * M * (d_in * h1d + h1d * h2d + h2d * d_out)
    bytes_accessed = (
        feat2d.size * feat2d.dtype.itemsize
        + sum(a.size * a.dtype.itemsize for a in (w1, b1, w2, b2, w3t, b3))
        + M * d_out * 4
        + (mask2d.size * mask2d.dtype.itemsize if has_mask else 0))
    cost = pl.CostEstimate(flops=flops, transcendentals=0,
                           bytes_accessed=bytes_accessed)

    row_specs = [pl.BlockSpec((tm, d_in), lambda i: (i, 0))]      # features
    operands = [feat2d]
    if has_mask:
        row_specs.append(pl.BlockSpec((tm, 1), lambda i: (i, 0)))  # mask
        operands.append(mask2d)
    weight_specs = [
        pl.BlockSpec((d_in, h1d), lambda i: (0, 0)),   # W1 (compute dtype)
        pl.BlockSpec((1, h1d), lambda i: (0, 0)),      # b1 (f32)
        pl.BlockSpec((h1d, h2d), lambda i: (0, 0)),    # W2 (compute dtype)
        pl.BlockSpec((1, h2d), lambda i: (0, 0)),      # b2 (f32)
        pl.BlockSpec((d_out, h2d), lambda i: (0, 0)),  # W3^T (f32)
        pl.BlockSpec((1, d_out), lambda i: (0, 0)),    # b3 (f32)
    ]
    operands += [w1, b1, w2, b2, w3t, b3]

    vmem_limit = _vmem_limit_bytes(
        tm, d_in, h1d, h2d, d_out, feat2d.dtype.itemsize,
        mask2d.dtype.itemsize if has_mask else 0)

    kernel = _kernel_masked if has_mask else _kernel_nomask
    out = pl.pallas_call(
        kernel,
        out_shape=jax.ShapeDtypeStruct((M, d_out), jnp.float32),
        grid_spec=pltpu.PrefetchScalarGridSpec(
            num_scalar_prefetch=0,
            grid=grid,
            in_specs=row_specs + weight_specs,
            out_specs=pl.BlockSpec((tm, d_out), lambda i: (i, 0)),
        ),
        compiler_params=pltpu.CompilerParams(
            dimension_semantics=("parallel",),
            vmem_limit_bytes=vmem_limit,
        ),
        cost_estimate=cost,
    )(*operands)
    return out


class AcquisitionFunctionNetFinalMLPPallas:
    """Pallas implementation of AcquisitionFunctionNetFinalMLP (default args)."""

    def __init__(self, input_dim, hidden_dims=(256, 64), output_dim=1,
                 activation='relu', layer_norm_before_end=False,
                 layer_norm_at_end=False, dropout=None,
                 compute_dtype=jnp.bfloat16, max_block_rows=2048,
                 num_tensorcores=None, key=None):
        if activation != 'relu':
            # TODO(synk): non-relu activations not implemented in-kernel.
            raise NotImplementedError("only activation='relu' is supported")
        if layer_norm_before_end or layer_norm_at_end or dropout:
            # TODO(synk): layer_norm_at_end (mean/std over dims (-3,-2)),
            # layer_norm_before_end and dropout paths are not implemented.
            raise NotImplementedError("layer norms / dropout not supported")
        if len(hidden_dims) != 2:
            # TODO(synk): generalize kernel to arbitrary MLP depth.
            raise NotImplementedError("kernel assumes exactly 2 hidden layers")

        if key is None:
            key = jax.random.PRNGKey(0)
        dims = [int(input_dim), int(hidden_dims[0]), int(hidden_dims[1]),
                int(output_dim)]
        ws, bs = [], []
        for i in range(3):
            key, kw, kb = jax.random.split(key, 3)
            bound = 1.0 / (dims[i] ** 0.5)
            # PyTorch nn.Linear default init: U(-1/sqrt(fan_in), 1/sqrt(fan_in))
            ws.append(jax.random.uniform(kw, (dims[i], dims[i + 1]),
                                         minval=-bound, maxval=bound,
                                         dtype=jnp.float32))
            bs.append(jax.random.uniform(kb, (1, dims[i + 1]),
                                         minval=-bound, maxval=bound,
                                         dtype=jnp.float32))

        self.input_dim = dims[0]
        self.output_dim = dims[3]
        self.compute_dtype = compute_dtype
        self.max_block_rows = int(max_block_rows)
        self.num_tensorcores = (int(num_tensorcores) if num_tensorcores
                                else _detect_num_tensorcores())
        # MXU layers stored in compute_dtype (bf16 default); layer 3 is the
        # VPU/XLU reduce, kept in f32 (it is tiny).  w3 is stored transposed
        # as (output_dim, hidden_dims[1]) so the kernel needs no transpose.
        self.w1 = ws[0].astype(compute_dtype)
        self.w2 = ws[1].astype(compute_dtype)
        self.w3t = jnp.transpose(ws[2])     # (d_out, h2), f32
        self.b1, self.b2, self.b3 = bs      # f32, shapes (1, h)

    def _row_tile(self, M):
        """Pick a static row tile from _TM_BUCKETS.

        Largest bucket with tm <= ceil(M / num_tensorcores): amortizes per-step
        overhead (single-TC v5e/v6e get the biggest tile M allows) while
        keeping grid >= num_tensorcores on v7x.  Tiny problems shrink to one
        8-aligned block so the block never exceeds the array.
        """
        rows_per_core = _cdiv(M, self.num_tensorcores)
        tm = _TM_BUCKETS[0]
        for b in _TM_BUCKETS:
            if b <= rows_per_core and b <= self.max_block_rows:
                tm = b
        cap = (M // 8) * 8 if M >= 8 else M   # never issue a block taller than M
        return max(1, min(tm, cap))

    def __call__(self, features, x_hist=None, y_hist=None, x_cand=None,
                 hist_mask=None, cand_mask=None, stdvs=None):
        # features: (*, n_cand, input_dim) -> rows (M, input_dim), feature
        # axis last (maps to TPU lanes).  No dtype cast here: bf16 features
        # stream at half the HBM bytes; f32 features are cast in VMEM.
        orig_shape = features.shape
        d_in = orig_shape[-1]
        assert d_in == self.input_dim
        feat2d = features.reshape(-1, d_in)
        M = feat2d.shape[0]

        mask2d = None
        if cand_mask is not None:
            # Accepts (*, n_cand) or (*, n_cand, 1); applied per candidate row.
            # Kept in its native (narrow) dtype; the kernel casts in-register.
            mask2d = cand_mask.reshape(-1, 1)
            if mask2d.dtype == jnp.bool_:
                mask2d = mask2d.astype(jnp.bfloat16)
            assert mask2d.shape[0] == M

        tm = self._row_tile(M)
        out = _run_mlp(feat2d, self.w1, self.b1, self.w2, self.b2,
                       self.w3t, self.b3, mask2d, tm=tm)
        return out.reshape(orig_shape[:-1] + (self.output_dim,))


def _reference(features, w1, b1, w2, b2, w3t, b3, cand_mask, compute_dtype):
    """Plain-JAX mirror of the kernel's mixed-precision math."""
    d_in = features.shape[-1]
    x = features.reshape(-1, d_in).astype(compute_dtype)
    h1 = jnp.maximum(
        jnp.dot(x, w1, preferred_element_type=jnp.float32) + b1, 0.0)
    h2 = jnp.maximum(
        jnp.dot(h1.astype(compute_dtype), w2,
                preferred_element_type=jnp.float32) + b2, 0.0)
    out = jnp.dot(h2, jnp.transpose(w3t),
                  preferred_element_type=jnp.float32) + b3
    if cand_mask is not None:
        out = out * cand_mask.reshape(-1, 1).astype(jnp.float32)
    return out.reshape(features.shape[:-1] + (w3t.shape[0],))


if __name__ == "__main__":
    key = jax.random.PRNGKey(0)
    k_feat, k_mask, k_params, k_feat2, k_mask2 = jax.random.split(key, 5)

    batch = 2
    n_cand = 8
    input_dim = 32

    features = jax.random.normal(k_feat, (batch, n_cand, input_dim),
                                 dtype=jnp.float32)
    cand_mask = (jax.random.uniform(k_mask, (batch, n_cand)) > 0.3).astype(
        jnp.float32)

    model = AcquisitionFunctionNetFinalMLPPallas(
        input_dim=input_dim, hidden_dims=(256, 64), output_dim=1,
        key=k_params)

    # Masked path (small: single block).
    out = model(features, x_hist=None, y_hist=None, x_cand=None,
                cand_mask=cand_mask)
    out = jax.block_until_ready(out)
    ref = _reference(features, model.w1, model.b1, model.w2, model.b2,
                     model.w3t, model.b3, cand_mask, model.compute_dtype)
    assert out.shape == (batch, n_cand, 1), out.shape
    assert jnp.allclose(out, ref, atol=1e-3, rtol=1e-3), (
        float(jnp.max(jnp.abs(out - ref))))

    # No-mask path (separate kernel variant).
    out2 = jax.block_until_ready(model(features))
    ref2 = _reference(features, model.w1, model.b1, model.w2, model.b2,
                      model.w3t, model.b3, None, model.compute_dtype)
    assert out2.shape == (batch, n_cand, 1), out2.shape
    assert jnp.allclose(out2, ref2, atol=1e-3, rtol=1e-3), (
        float(jnp.max(jnp.abs(out2 - ref2))))

    # Medium masked path: exercises the bucketed tile + ragged final block.
    batch3, n_cand3 = 3, 60   # M = 180 rows -> tm = 128, grid = 2 (ragged)
    features3 = jax.random.normal(k_feat2, (batch3, n_cand3, input_dim),
                                  dtype=jnp.float32)
    cand_mask3 = (jax.random.uniform(k_mask2, (batch3, n_cand3)) > 0.5).astype(
        jnp.float32)
    out3 = jax.block_until_ready(model(features3, cand_mask=cand_mask3))
    ref3 = _reference(features3, model.w1, model.b1, model.w2, model.b2,
                      model.w3t, model.b3, cand_mask3, model.compute_dtype)
    assert out3.shape == (batch3, n_cand3, 1), out3.shape
    assert jnp.allclose(out3, ref3, atol=1e-3, rtol=1e-3), (
        float(jnp.max(jnp.abs(out3 - ref3))))

    print("KERNEL_OK")
</pallas_src>

<mosaic_0001>
module attributes {stable_mosaic.version = 11 : i64} {
  func.func @_kernel_masked(%arg0: i32, %arg1: memref<16x32xf32, #tpu.memory_space<vmem>>, %arg2: memref<16x1xf32, #tpu.memory_space<vmem>>, %arg3: memref<32x256xbf16, #tpu.memory_space<vmem>>, %arg4: memref<1x256xf32, #tpu.memory_space<vmem>>, %arg5: memref<256x64xbf16, #tpu.memory_space<vmem>>, %arg6: memref<1x64xf32, #tpu.memory_space<vmem>>, %arg7: memref<1x64xf32, #tpu.memory_space<vmem>>, %arg8: memref<1x1xf32, #tpu.memory_space<vmem>>, %arg9: memref<16x1xf32, #tpu.memory_space<vmem>>) attributes {dimension_semantics = [#tpu.dimension_semantics<parallel>], iteration_bounds = array<i64: 1>, scalar_prefetch = 0 : i64, scratch_operands = 0 : i64, tpu.core_type = #tpu.core_type<tc>, window_params = [{transform_indices = @transform_0, window_bounds = array<i64: 16, 32>}, {transform_indices = @transform_1, window_bounds = array<i64: 16, 1>}, {pipeline_mode = #tpu.pipeline_mode<synchronous>, transform_indices = @transform_2, window_bounds = array<i64: 32, 256>}, {pipeline_mode = #tpu.pipeline_mode<synchronous>, transform_indices = @transform_3, window_bounds = array<i64: 1, 256>}, {pipeline_mode = #tpu.pipeline_mode<synchronous>, transform_indices = @transform_4, window_bounds = array<i64: 256, 64>}, {pipeline_mode = #tpu.pipeline_mode<synchronous>, transform_indices = @transform_5, window_bounds = array<i64: 1, 64>}, {pipeline_mode = #tpu.pipeline_mode<synchronous>, transform_indices = @transform_6, window_bounds = array<i64: 1, 64>}, {pipeline_mode = #tpu.pipeline_mode<synchronous>, transform_indices = @transform_7, window_bounds = array<i64: 1, 1>}, {transform_indices = @transform_8, window_bounds = array<i64: 16, 1>}]} {
    %c0 = arith.constant 0 : index
    %c0_0 = arith.constant 0 : index
    %0 = vector.load %arg1[%c0, %c0_0] : memref<16x32xf32, #tpu.memory_space<vmem>>, vector<16x32xf32>
    %1 = arith.truncf %0 : vector<16x32xf32> to vector<16x32xbf16>
    %c0_1 = arith.constant 0 : index
    %c0_2 = arith.constant 0 : index
    %2 = vector.load %arg3[%c0_1, %c0_2] : memref<32x256xbf16, #tpu.memory_space<vmem>>, vector<32x256xbf16>
    %cst = arith.constant dense<0.000000e+00> : vector<16x256xf32>
    %3 = tpu.matmul %1, %2, %cst {dimension_numbers = #tpu.dot_dimension_numbers<[1], [0], [0], [1], [0, 0, 1, 1], [], []>} : vector<16x32xbf16>, vector<32x256xbf16>, vector<16x256xf32> -> vector<16x256xf32>
    %c0_3 = arith.constant 0 : index
    %c0_4 = arith.constant 0 : index
    %4 = vector.load %arg4[%c0_3, %c0_4] : memref<1x256xf32, #tpu.memory_space<vmem>>, vector<1x256xf32>
    %5 = vector.broadcast %4 : vector<1x256xf32> to vector<16x256xf32>
    %6 = arith.addf %3, %5 : vector<16x256xf32>
    %cst_5 = arith.constant 0.000000e+00 : f32
    %7 = vector.broadcast %cst_5 : f32 to vector<16x256xf32>
    %8 = arith.maximumf %6, %7 : vector<16x256xf32>
    %9 = arith.truncf %8 : vector<16x256xf32> to vector<16x256xbf16>
    %c0_6 = arith.constant 0 : index
    %c0_7 = arith.constant 0 : index
    %10 = vector.load %arg5[%c0_6, %c0_7] : memref<256x64xbf16, #tpu.memory_space<vmem>>, vector<256x64xbf16>
    %cst_8 = arith.constant dense<0.000000e+00> : vector<16x64xf32>
    %11 = tpu.matmul %9, %10, %cst_8 {dimension_numbers = #tpu.dot_dimension_numbers<[1], [0], [0], [1], [0, 0, 1, 1], [], []>} : vector<16x256xbf16>, vector<256x64xbf16>, vector<16x64xf32> -> vector<16x64xf32>
    %c0_9 = arith.constant 0 : index
    %c0_10 = arith.constant 0 : index
    %12 = vector.load %arg6[%c0_9, %c0_10] : memref<1x64xf32, #tpu.memory_space<vmem>>, vector<1x64xf32>
    %13 = vector.broadcast %12 : vector<1x64xf32> to vector<16x64xf32>
    %14 = arith.addf %11, %13 : vector<16x64xf32>
    %cst_11 = arith.constant 0.000000e+00 : f32
    %15 = vector.broadcast %cst_11 : f32 to vector<16x64xf32>
    %16 = arith.maximumf %14, %15 : vector<16x64xf32>
    %c0_12 = arith.constant 0 : index
    %c0_13 = arith.constant 0 : index
    %17 = vector.load %arg7[%c0_12, %c0_13] : memref<1x64xf32, #tpu.memory_space<vmem>>, vector<1x64xf32>
    %18 = vector.broadcast %17 : vector<1x64xf32> to vector<16x64xf32>
    %19 = arith.mulf %16, %18 : vector<16x64xf32>
    %cst_14 = arith.constant dense<0.000000e+00> : vector<16xf32>
    %20 = vector.multi_reduction <add>, %19, %cst_14 [1] : vector<16x64xf32> to vector<16xf32>
    %21 = vector.shape_cast %20 : vector<16xf32> to vector<16x1xf32>
    %c0_15 = arith.constant 0 : index
    %c0_16 = arith.constant 0 : index
    %22 = vector.load %arg8[%c0_15, %c0_16] : memref<1x1xf32, #tpu.memory_space<vmem>>, vector<1x1xf32>
    %23 = vector.broadcast %22 : vector<1x1xf32> to vector<16x1xf32>
    %24 = arith.addf %21, %23 : vector<16x1xf32>
    %c0_17 = arith.constant 0 : index
    %c0_18 = arith.constant 0 : index
    %25 = vector.load %arg2[%c0_17, %c0_18] : memref<16x1xf32, #tpu.memory_space<vmem>>, vector<16x1xf32>
    %26 = arith.mulf %24, %25 : vector<16x1xf32>
    %c0_19 = arith.constant 0 : index
    %c0_20 = arith.constant 0 : index
    %27 = vector.load %arg9[%c0_19, %c0_20] : memref<16x1xf32, #tpu.memory_space<vmem>>, vector<16x1xf32>
    tpu.vector_store %arg9[%c0_19, %c0_20], %26 {strides = array<i32>} : memref<16x1xf32, #tpu.memory_space<vmem>>, vector<16x1xf32>,
    return
  }
  func.func @transform_0(%arg0: i32) -> (i32, i32) {
    %c0_i32 = arith.constant 0 : i32
    %c0_i32_0 = arith.constant 0 : i32
    return %arg0, %c0_i32 : i32, i32
  }
  func.func @transform_1(%arg0: i32) -> (i32, i32) {
    %c0_i32 = arith.constant 0 : i32
    %c0_i32_0 = arith.constant 0 : i32
    return %arg0, %c0_i32 : i32, i32
  }
  func.func @transform_2(%arg0: i32) -> (i32, i32) {
    %c0_i32 = arith.constant 0 : i32
    %c0_i32_0 = arith.constant 0 : i32
    %c0_i32_1 = arith.constant 0 : i32
    return %c0_i32, %c0_i32_0 : i32, i32
  }
  func.func @transform_3(%arg0: i32) -> (i32, i32) {
    %c0_i32 = arith.constant 0 : i32
    %c0_i32_0 = arith.constant 0 : i32
    %c0_i32_1 = arith.constant 0 : i32
    return %c0_i32, %c0_i32_0 : i32, i32
  }
  func.func @transform_4(%arg0: i32) -> (i32, i32) {
    %c0_i32 = arith.constant 0 : i32
    %c0_i32_0 = arith.constant 0 : i32
    %c0_i32_1 = arith.constant 0 : i32
    return %c0_i32, %c0_i32_0 : i32, i32
  }
  func.func @transform_5(%arg0: i32) -> (i32, i32) {
    %c0_i32 = arith.constant 0 : i32
    %c0_i32_0 = arith.constant 0 : i32
    %c0_i32_1 = arith.constant 0 : i32
    return %c0_i32, %c0_i32_0 : i32, i32
  }
  func.func @transform_6(%arg0: i32) -> (i32, i32) {
    %c0_i32 = arith.constant 0 : i32
    %c0_i32_0 = arith.constant 0 : i32
    %c0_i32_1 = arith.constant 0 : i32
    return %c0_i32, %c0_i32_0 : i32, i32
  }
  func.func @transform_7(%arg0: i32) -> (i32, i32) {
    %c0_i32 = arith.constant 0 : i32
    %c0_i32_0 = arith.constant 0 : i32
    %c0_i32_1 = arith.constant 0 : i32
    return %c0_i32, %c0_i32_0 : i32, i32
  }
  func.func @transform_8(%arg0: i32) -> (i32, i32) {
    %c0_i32 = arith.constant 0 : i32
    %c0_i32_0 = arith.constant 0 : i32
    return %arg0, %c0_i32 : i32, i32
  }
}

</mosaic_0001>

<llo_original>
// kernel: _run_mlp.1
$region0: #{_run_mlp.1}
  #allocation0 [shape = 'u32[]', space=smem, size = 0x4, offset = 0x4, fixed_abs, tag = 'smem constant byte address 0x4 - core index']
  #allocation1 [shape = 'u32[144,128]{1,0:T(1,128)}', space=vmem, size = 0x12000, scoped, tag = 'internal scratch']
  #allocation2 [shape = 'f32[1,1]{1,0:T(1,128)S(1)}', space=vmem, size = 0x200, scoped, tag = 'scoped memory for _run_mlp.1']
  %s0 = inlined_call_operand.vmem [shape: f32[16,32], index: 0, kind: input, shape index: {}]
  %s1 = inlined_call_operand.vmem [shape: f32[16,1], index: 1, kind: input, shape index: {}]
  %s2 = inlined_call_operand.vmem [shape: bf16[32,256], index: 2, kind: input, shape index: {}]
  %s3 = inlined_call_operand.vmem [shape: f32[1,256], index: 3, kind: input, shape index: {}]
  %s4 = inlined_call_operand.vmem [shape: bf16[256,64], index: 4, kind: input, shape index: {}]
  %s5 = inlined_call_operand.vmem [shape: f32[1,64], index: 5, kind: input, shape index: {}]
  %s6 = inlined_call_operand.vmem [shape: f32[1,64], index: 6, kind: input, shape index: {}]
  %s7 = inlined_call_operand.<no memory space> [shape: f32[1,1], index: 7, kind: input, shape index: {}]
  %s8 = inlined_call_operand.vmem [shape: f32[16,1], index: 8, kind: output, shape index: {}]
  %s9 = sld [smem:[#allocation0]]
  $region42: #{_run_mlp.1} parent=0
    _
  %s11 = ssub.s32 1, %s9
  %s12 = scalar_select 0, %s11, %s9
  %v13 = vstv %s7
  %14 = vst [vmem:[#allocation2] sm:$0x1] %v13
  // Predicated region
  $region2: #{_run_mlp.1} parent=0 // pred_check
    _
  $region3: #{_run_mlp.1} parent=0 // pred_check_branch
    %16 = sbr.rel (0) target = $region5
  $region4: #{_run_mlp.1} parent=0 // pred_region
    _
  $region5: #{_run_mlp.1} parent=0 // pred_fallthru
    _
  // Predicated region
  $region6: #{_run_mlp.1} parent=0 // pred_check
    _
  $region7: #{_run_mlp.1} parent=0 // pred_check_branch
    %18 = sbr.rel (0) target = $region9
  $region8: #{_run_mlp.1} parent=0 // pred_region
    _
  $region9: #{_run_mlp.1} parent=0 // pred_fallthru
    _
  // Predicated region
  $region10: #{_run_mlp.1} parent=0 // pred_check
    _
  $region11: #{_run_mlp.1} parent=0 // pred_check_branch
    %20 = sbr.rel (0) target = $region13
  $region12: #{_run_mlp.1} parent=0 // pred_region
    _
  $region13: #{_run_mlp.1} parent=0 // pred_fallthru
    _
  // Predicated region
  $region14: #{_run_mlp.1} parent=0 // pred_check
    _
  $region15: #{_run_mlp.1} parent=0 // pred_check_branch
    %22 = sbr.rel (0) target = $region17
  $region16: #{_run_mlp.1} parent=0 // pred_region
    _
  $region17: #{_run_mlp.1} parent=0 // pred_fallthru
    _
  // Predicated region
  $region18: #{_run_mlp.1} parent=0 // pred_check
    _
  $region19: #{_run_mlp.1} parent=0 // pred_check_branch
    %24 = sbr.rel (0) target = $region21
  $region20: #{_run_mlp.1} parent=0 // pred_region
    _
  $region21: #{_run_mlp.1} parent=0 // pred_fallthru
    _
  // Predicated region
  $region22: #{_run_mlp.1} parent=0 // pred_check
    _
  $region23: #{_run_mlp.1} parent=0 // pred_check_branch
    %26 = sbr.rel (0) target = $region25
  $region24: #{_run_mlp.1} parent=0 // pred_region
    _
  $region25: #{_run_mlp.1} parent=0 // pred_fallthru
    _
  // Predicated region
  $region26: #{_run_mlp.1} parent=0 // pred_check
    _
  $region27: #{_run_mlp.1} parent=0 // pred_check_branch
    %28 = sbr.rel (0) target = $region29
  $region28: #{_run_mlp.1} parent=0 // pred_region
    _
  $region29: #{_run_mlp.1} parent=0 // pred_fallthru
    _
  // Predicated region
  $region30: #{_run_mlp.1} parent=0 // pred_check
    _
  $region31: #{_run_mlp.1} parent=0 // pred_check_branch
    %30 = sbr.rel (0) target = $region33
  $region32: #{_run_mlp.1} parent=0 // pred_region
    _
  $region33: #{_run_mlp.1} parent=0 // pred_fallthru
    _
  %v32 = vld [vmem:[%s0] sm:$0xff]
  %v33 = vld [vmem:[%s0 + $0x8] sm:$0xff]
  %v34 = vpack.c.bf16 %v33, %v32
  %v35 = vld [vmem:[%s2] sm:$0xff]
  %v36 = vld [vmem:[%s2 + $0x8] sm:$0xff]
  %v37 = vld [vmem:[%s2 + $0x10] sm:$0xff]
  %v38 = vld [vmem:[%s2 + $0x18] sm:$0xff]
  %v39 = vld [vmem:[%s3] sm:$0x3]
  %v41 = vlaneseq
  %v42 = vshrl.u32 %v41, 7
  %v43 = vsub.s32 0, %v42
  %v44 = vrot.slane %v39, %v43
  %v45 = vlaneseq
  %v46 = vshrl.u32 %v45, 7
  %v47 = vsub.s32 1, %v46
  %v48 = vrot.slane %v39, %v47
  %v55 = vunpack.c.l.b16 %v35
  %v56 = vunpack.c.h.b16 %v35
  %v57 = vunpack.c.l.b16 %v36
  %v58 = vunpack.c.h.b16 %v36
  %v59 = vunpack.c.l.b16 %v37
  %v60 = vunpack.c.h.b16 %v37
  %v61 = vunpack.c.l.b16 %v38
  %v62 = vunpack.c.h.b16 %v38
  %v63 = vpack.c.b16 %v57, %v55
  %v64 = vpack.c.b16 %v58, %v56
  %v65 = vpack.c.b16 %v61, %v59
  %v66 = vpack.c.b16 %v62, %v60
  %vm71 = vcmask 261120
  %v73 = vsel %vm71, %v34, 0
  %75 = vmatprep.subr.bf16.mxu0 %v64
  %76 = vmatpush1.bf16.msra.mxu0 %v63
  %77 = vmatprep.subr.bf16.mxu0 %v66
  %78 = vmatpush1.bf16.msra.mxu0 %v65
  %79 = vmatprep.subr.bf16.mxu0 0
  %80 = vmatpush1.bf16.msra.mxu0 0
  %81 = vmatprep.subr.bf16.mxu0 0
  %82 = vmatpush1.bf16.msra.mxu0 0
  %83 = vmatprep.subr.bf16.mxu0 0
  %84 = vmatpush1.bf16.msra.mxu0 0
  %85 = vmatprep.subr.bf16.mxu0 0
  %86 = vmatpush1.bf16.msra.mxu0 0
  %87 = vmatprep.subr.bf16.mxu0 0
  %88 = vmatpush1.bf16.msra.mxu0 0
  %89 = vmatprep.subr.bf16.mxu0 0
  %90 = vmatpush1.bf16.msra.mxu0 0
  %91 = vmatprep.subr.bf16.mxu0 0
  %92 = vmatpush1.bf16.msra.mxu0 0
  %93 = vmatprep.subr.bf16.mxu0 0
  %94 = vmatpush1.bf16.msra.mxu0 0
  %95 = vmatprep.subr.bf16.mxu0 0
  %96 = vmatpush1.bf16.msra.mxu0 0
  %97 = vmatprep.subr.bf16.mxu0 0
  %98 = vmatpush1.bf16.msra.mxu0 0
  %99 = vmatprep.subr.bf16.mxu0 0
  %100 = vmatpush1.bf16.msra.mxu0 0
  %101 = vmatprep.subr.bf16.mxu0 0
  %102 = vmatpush1.bf16.msra.mxu0 0
  %103 = vmatprep.subr.bf16.mxu0 0
  %104 = vmatpush1.bf16.msra.mxu0 0
  %105 = vmatprep.subr.bf16.mxu0 0
  %106 = vmatpush1.bf16.msra.mxu0 0
  %107 = vmatprep.mubr.bf16.mxu0 0
  %108 = vmatmul.mubr.bf16.gmra.mrb[0].mxu0 %v73
  %v109 = vpop.f32.mrb[0].mxu0
  %v110 = vadd.f32 %v44, %v109
  %v111 = vpop.f32.mrb[0].mxu0
  %v112 = vadd.f32 %v48, %v111
  %v113 = vpop.f32.mrb[0].mxu0
  %v114 = vadd.f32 %v44, %v113
  %v115 = vpop.f32.mrb[0].mxu0
  %v116 = vadd.f32 %v48, %v115
  %117 = vdwg.mxu0
  %v118 = vmax.f32 %v110, 0.0
  %v119 = vmax.f32 %v112, 0.0
  %v120 = vmax.f32 %v114, 0.0
  %v121 = vmax.f32 %v116, 0.0
  %v122 = vpack.c.bf16 %v120, %v118
  %v123 = vpack.c.bf16 %v121, %v119
  %v124 = vld [vmem:[%s4] sm:$0xf]
  %v125 = vld [vmem:[%s4 + $0x4] sm:$0xf]
  %v126 = vld [vmem:[%s4 + $0x8] sm:$0xf]
  %v127 = vld [vmem:[%s4 + $0xc] sm:$0xf]
  %v128 = vld [vmem:[%s4 + $0x10] sm:$0xf]
  %v129 = vld [vmem:[%s4 + $0x14] sm:$0xf]
  %v130 = vld [vmem:[%s4 + $0x18] sm:$0xf]
  %v131 = vld [vmem:[%s4 + $0x1c] sm:$0xf]
  %v132 = vld [vmem:[%s4 + $0x20] sm:$0xf]
  %v133 = vld [vmem:[%s4 + $0x24] sm:$0xf]
  %v134 = vld [vmem:[%s4 + $0x28] sm:$0xf]
  %v135 = vld [vmem:[%s4 + $0x2c] sm:$0xf]
  %v136 = vld [vmem:[%s4 + $0x30] sm:$0xf]
  %v137 = vld [vmem:[%s4 + $0x34] sm:$0xf]
  %v138 = vld [vmem:[%s4 + $0x38] sm:$0xf]
  %v139 = vld [vmem:[%s4 + $0x3c] sm:$0xf]
  %v140 = vld [vmem:[%s4 + $0x40] sm:$0xf]
  %v141 = vld [vmem:[%s4 + $0x44] sm:$0xf]
  %v142 = vld [vmem:[%s4 + $0x48] sm:$0xf]
  %v143 = vld [vmem:[%s4 + $0x4c] sm:$0xf]
  %v144 = vld [vmem:[%s4 + $0x50] sm:$0xf]
  %v145 = vld [vmem:[%s4 + $0x54] sm:$0xf]
  %v146 = vld [vmem:[%s4 + $0x58] sm:$0xf]
  %v147 = vld [vmem:[%s4 + $0x5c] sm:$0xf]
  %v148 = vld [vmem:[%s4 + $0x60] sm:$0xf]
  %v149 = vld [vmem:[%s4 + $0x64] sm:$0xf]
  %v150 = vld [vmem:[%s4 + $0x68] sm:$0xf]
  %v151 = vld [vmem:[%s4 + $0x6c] sm:$0xf]
  %v152 = vld [vmem:[%s4 + $0x70] sm:$0xf]
  %v153 = vld [vmem:[%s4 + $0x74] sm:$0xf]
  %v154 = vld [vmem:[%s4 + $0x78] sm:$0xf]
  %v155 = vld [vmem:[%s4 + $0x7c] sm:$0xf]
  %v156 = vld [vmem:[%s5] sm:$0x1]
  %v158 = vlaneseq
  %v159 = vshrl.u32 %v158, 7
  %v160 = vsub.s32 0, %v159
  %v161 = vrot.slane %v156, %v160
  %v195 = vunpack.c.l.b16 %v124
  %v196 = vunpack.c.l.b16 %v125
  %v197 = vunpack.c.l.b16 %v126
  %v198 = vunpack.c.l.b16 %v127
  %v199 = vunpack.c.l.b16 %v128
  %v200 = vunpack.c.l.b16 %v129
  %v201 = vunpack.c.l.b16 %v130
  %v202 = vunpack.c.l.b16 %v131
  %v203 = vunpack.c.l.b16 %v132
  %v204 = vunpack.c.l.b16 %v133
  %v205 = vunpack.c.l.b16 %v134
  %v206 = vunpack.c.l.b16 %v135
  %v207 = vunpack.c.l.b16 %v136
  %v208 = vunpack.c.l.b16 %v137
  %v209 = vunpack.c.l.b16 %v138
  %v210 = vunpack.c.l.b16 %v139
  %v211 = vunpack.c.l.b16 %v140
  %v212 = vunpack.c.l.b16 %v141
  %v213 = vunpack.c.l.b16 %v142
  %v214 = vunpack.c.l.b16 %v143
  %v215 = vunpack.c.l.b16 %v144
  %v216 = vunpack.c.l.b16 %v145
  %v217 = vunpack.c.l.b16 %v146
  %v218 = vunpack.c.l.b16 %v147
  %v219 = vunpack.c.l.b16 %v148
  %v220 = vunpack.c.l.b16 %v149
  %v221 = vunpack.c.l.b16 %v150
  %v222 = vunpack.c.l.b16 %v151
  %v223 = vunpack.c.l.b16 %v152
  %v224 = vunpack.c.l.b16 %v153
  %v225 = vunpack.c.l.b16 %v154
  %v226 = vunpack.c.l.b16 %v155
  %v227 = vpack.c.b16 %v196, %v195
  %v228 = vpack.c.b16 %v198, %v197
  %v229 = vpack.c.b16 %v200, %v199
  %v230 = vpack.c.b16 %v202, %v201
  %v231 = vpack.c.b16 %v204, %v203
  %v232 = vpack.c.b16 %v206, %v205
  %v233 = vpack.c.b16 %v208, %v207
  %v234 = vpack.c.b16 %v210, %v209
  %v235 = vpack.c.b16 %v212, %v211
  %v236 = vpack.c.b16 %v214, %v213
  %v237 = vpack.c.b16 %v216, %v215
  %v238 = vpack.c.b16 %v218, %v217
  %v239 = vpack.c.b16 %v220, %v219
  %v240 = vpack.c.b16 %v222, %v221
  %v241 = vpack.c.b16 %v224, %v223
  %v242 = vpack.c.b16 %v226, %v225
  %259 = vmatprep.subr.bf16.mxu0 0
  %260 = vmatpush1.bf16.msra.mxu0 %v227
  %261 = vmatprep.subr.bf16.mxu0 0
  %262 = vmatpush1.bf16.msra.mxu0 %v228
  %263 = vmatprep.subr.bf16.mxu0 0
  %264 = vmatpush1.bf16.msra.mxu0 %v229
  %265 = vmatprep.subr.bf16.mxu0 0
  %266 = vmatpush1.bf16.msra.mxu0 %v230
  %267 = vmatprep.subr.bf16.mxu0 0
  %268 = vmatpush1.bf16.msra.mxu0 %v231
  %269 = vmatprep.subr.bf16.mxu0 0
  %270 = vmatpush1.bf16.msra.mxu0 %v232
  %271 = vmatprep.subr.bf16.mxu0 0
  %272 = vmatpush1.bf16.msra.mxu0 %v233
  %273 = vmatprep.subr.bf16.mxu0 0
  %274 = vmatpush1.bf16.msra.mxu0 %v234
  %275 = vmatprep.subr.bf16.mxu0 0
  %276 = vmatpush1.bf16.msra.mxu0 %v235
  %277 = vmatprep.subr.bf16.mxu0 0
  %278 = vmatpush1.bf16.msra.mxu0 %v236
  %279 = vmatprep.subr.bf16.mxu0 0
  %280 = vmatpush1.bf16.msra.mxu0 %v237
  %281 = vmatprep.subr.bf16.mxu0 0
  %282 = vmatpush1.bf16.msra.mxu0 %v238
  %283 = vmatprep.subr.bf16.mxu0 0
  %284 = vmatpush1.bf16.msra.mxu0 %v239
  %285 = vmatprep.subr.bf16.mxu0 0
  %286 = vmatpush1.bf16.msra.mxu0 %v240
  %287 = vmatprep.subr.bf16.mxu0 0
  %288 = vmatpush1.bf16.msra.mxu0 %v241
  %289 = vmatprep.subr.bf16.mxu0 0
  %290 = vmatpush1.bf16.msra.mxu0 %v242
  %291 = vmatprep.mubr.bf16.mxu0 %v123
  %292 = vmatmul.mubr.bf16.gmra.mrb[0].mxu0 %v122
  %v293 = vpop.f32.mrb[0].mxu0
  %v294 = vadd.f32 %v161, %v293
  %v295 = vpop.f32.mrb[0].mxu0
  %v296 = vpop.f32.mrb[0].mxu0
  %v297 = vadd.f32 %v161, %v296
  %v298 = vpop.f32.mrb[0].mxu0
  %299 = vdwg.mxu0
  %v300 = vmax.f32 %v294, 0.0
  %v301 = vmax.f32 %v297, 0.0
  %v302 = vld [vmem:[%s6] sm:$0x1]
  %v304 = vlaneseq
  %v305 = vshrl.u32 %v304, 7
  %v306 = vsub.s32 0, %v305
  %v307 = vrot.slane %v302, %v306
  %v309 = vmul.f32 %v300, %v307
  %v310 = vmul.f32 %v301, %v307
  %vm311 = vcmask 523264
  %v312 = vsel %vm311, %v309, 0.0
  %313 = vadd.xlane.f32.xlu0 %v312
  %v314 = vpop.xlane.xlu0 %313
  %v315 = vsel %vm311, %v310, 0.0
  %316 = vadd.xlane.f32.xlu0 %v315
  %v317 = vpop.xlane.xlu0 %316
  %v318 = vld [vmem:[#allocation2] sm:$0x1]
  %v320 = vlaneseq
  %v321 = vshrl.u32 %v320, 7
  %v322 = vsub.s32 0, %v321
  %v323 = vrot.slane %v318, %v322
  %v325 = vadd.f32 %v314, %v323
  %v326 = vadd.f32 %v317, %v323
  %v327 = vld [vmem:[%s1] sm:$0xff]
  %v328 = vld [vmem:[%s1 + $0x8] sm:$0xff]
  %v329 = vmul.f32 %v325, %v327
  %v330 = vmul.f32 %v326, %v328
  %vm331 = vcmask 7168
  %332 = vst.msk [vmem:[%s8] sm:$0xff] %vm331, %v329
  %333 = vst.msk [vmem:[%s8 + $0x8] sm:$0xff] %vm331, %v330
  // Predicated region
  $region34: #{_run_mlp.1} parent=0 // pred_check
    _
  $region35: #{_run_mlp.1} parent=0 // pred_check_branch
    %335 = sbr.rel (0) target = $region37
  $region36: #{_run_mlp.1} parent=0 // pred_region
    _
  $region37: #{_run_mlp.1} parent=0 // pred_fallthru
    _
  // Predicated region
  $region38: #{_run_mlp.1} parent=0 // pred_check
    _
  $region39: #{_run_mlp.1} parent=0 // pred_check_branch
    %337 = sbr.rel (0) target = $region41
  $region40: #{_run_mlp.1} parent=0 // pred_region
    _
  $region41: #{_run_mlp.1} parent=0 // pred_fallthru
    _

</llo_original>
